<compile_context>
chip_gen: v7x
topology: tpu7x:2x2x1
jax: 0.10.0
libtpu: 0.0.40
codegen_flags: <defaults>
</compile_context>

<pallas_src>
import jax
import jax.numpy as jnp
from jax.experimental import pallas as pl
from jax.experimental.pallas import tpu as pltpu

ALPHA = 1.0
BETA = 0.25
TEMPERATURE = 1.0


def _make_dkd_kernel(class_axis, batch_size, tile_batch, alpha, beta, temperature):
    """Kernel over one batch tile.

    class_axis == 1: refs are [tile_b, C]  (classes on lanes; large-C layout)
    class_axis == 0: refs are [C, tile_b]  (batch on lanes; small-C layout)
    """
    batch_axis = 1 - class_axis

    def kernel(ls_ref, lt_ref, tgt_ref, o_ref):
        ls = ls_ref[...].astype(jnp.float32)
        lt = lt_ref[...].astype(jnp.float32)
        if temperature != 1.0:                      # static Python branch
            inv_t = jnp.float32(1.0 / temperature)
            ls = ls * inv_t
            lt = lt * inv_t
        tgt = tgt_ref[...]                          # int32, [tile_b,1] or [1,tile_b]

        cls_ids = jax.lax.broadcasted_iota(jnp.int32, ls.shape, class_axis)
        is_gt = cls_ids == tgt                      # one-hot mask of the gt class

        # Fused softmax / log-softmax: one max, one exp, one class-sum per tensor.
        def logsoftmax_exp_sum(x):
            m = jnp.max(x, axis=class_axis, keepdims=True)
            z = x - m
            e = jnp.exp(z)
            s = jnp.sum(e, axis=class_axis, keepdims=True)
            return z - jnp.log(s), e, s             # log-softmax, exp(z), class sum

        logp_s, e_s, s_s = logsoftmax_exp_sum(ls)
        logp_t, e_t, s_t = logsoftmax_exp_sum(lt)
        pred_t = e_t / s_t                          # teacher softmax

        # Per-sample gt log-prob and non-gt ("other") probability mass.
        # Non-gt mass is summed directly (no 1 - p_gt cancellation; identical to
        # the reference's (p * other_mask).sum) and clamped so fully saturated
        # rows stay finite instead of producing inf / NaN.
        tiny = jnp.float32(1e-30)
        logp_s_gt = jnp.sum(jnp.where(is_gt, logp_s, 0.0), axis=class_axis, keepdims=True)
        logp_t_gt = jnp.sum(jnp.where(is_gt, logp_t, 0.0), axis=class_axis, keepdims=True)
        ps_ot = jnp.maximum(
            jnp.sum(jnp.where(is_gt, 0.0, e_s), axis=class_axis, keepdims=True) / s_s, tiny)
        pt_ot = jnp.maximum(
            jnp.sum(jnp.where(is_gt, 0.0, e_t), axis=class_axis, keepdims=True) / s_t, tiny)
        pt_gt = jnp.exp(logp_t_gt)
        log_ps_ot = jnp.log(ps_ot)
        log_pt_ot = jnp.log(pt_ot)

        # ---- TCKD: KL over the binary (target vs rest) distributions ----
        kl_gt = pt_gt * (logp_t_gt - logp_s_gt)
        tckd = kl_gt + pt_ot * (log_pt_ot - log_ps_ot)

        # ---- NCKD: KL over non-target classes, from the *unmasked* softmaxes ----
        #   sum_{j!=gt} pt2_j*(log_pt2_j - log_ps2_j)
        #     = (sum_j pred_t_j*(logp_t_j - logp_s_j) - kl_gt) / pt_ot
        #       + (log_ps_ot - log_pt_ot)
        kl_full = pred_t * (logp_t - logp_s)
        kl_nt = jnp.sum(kl_full, axis=class_axis, keepdims=True) - kl_gt
        nckd = kl_nt / pt_ot + (log_ps_ot - log_pt_ot)

        contrib = jnp.float32(alpha) * tckd + jnp.float32(beta) * nckd

        # Mask tail samples of a partial last block (no wrapper-side padding).
        sample_ids = (jax.lax.broadcasted_iota(jnp.int32, contrib.shape, batch_axis)
                      + pl.program_id(0) * tile_batch)
        contrib = jnp.where(sample_ids < batch_size, contrib, 0.0)

        # Single fused scalar reduction -> per-tile partial in SMEM.
        o_ref[0, 0] = jnp.sum(contrib)

    return kernel


def _round_up(x, m):
    return ((x + m - 1) // m) * m


def _physical_vmem_bytes():
    # Per-TensorCore VMEM: 128 MiB on v5e/v6e, 64 MiB on v7x.
    try:
        info = pltpu.get_tpu_info()
        v = getattr(info, "vmem_capacity_bytes", None)
        if v:
            return int(min(max(int(v), 16 * 1024 * 1024), 128 * 1024 * 1024))
    except Exception:
        pass
    return 64 * 1024 * 1024  # conservative fallback (v7x-sized)


def _choose_tile_b(B, C, itemsize, batch_on_lanes):
    """Batch-tile size from a per-chip VMEM budget and a minimum-DMA target."""
    # Lane tiling (128) when batch sits on lanes; sublane tiling (8 f32 / 16 bf16)
    # when batch sits on sublanes.
    align = 128 if batch_on_lanes else (16 if itemsize <= 2 else 8)
    if B <= align:
        return B                                    # one full-batch block

    # Peak VMEM bytes per batch sample:
    #   2 logits tensors x 2 pipeline buffers (input dtype)
    #   + ~8 live [*, C] f32 temporaries in the body
    #   + int32 target (x 2 pipeline buffers).
    per_sample = C * (2 * 2 * itemsize + 8 * 4) + 2 * 4
    budget = (3 * _physical_vmem_bytes()) // 4      # headroom for Mosaic scratch
    cap = max(budget // per_sample, align)

    # Amortize per-grid-step overhead: target >= ~2 MiB of logits per block.
    want = max((2 * 1024 * 1024) // max(C * itemsize, 1), align)

    # Keep >= ~4 grid steps so the "parallel" batch axis can be split across
    # both TensorCores on megacore chips.
    quarter = max(_round_up(-(-B // 4), align), align)

    tile = min(want, cap, quarter)
    tile = max((tile // align) * align, align)
    return min(tile, B)


def dkd_loss(logits_student, logits_teacher, target, *, tile_b=None):
    """DKD loss. logits_*: [B, C] float32/bfloat16; target: [B] integer class ids."""
    B, C = logits_student.shape
    itemsize = jnp.dtype(logits_student.dtype).itemsize

    # Tiny class counts (C << 128) would leave most of every vreg lane and most
    # of every (8,128) DMA tile empty with classes on lanes; put the batch on the
    # lane axis instead and reduce over classes along sublanes.
    batch_on_lanes = C < 128

    if batch_on_lanes:
        ls = logits_student.T                       # [C, B]
        lt = logits_teacher.T
        tgt = target.reshape(1, B).astype(jnp.int32)
        class_axis = 0
    else:
        ls = logits_student                         # [B, C]
        lt = logits_teacher
        tgt = target.reshape(B, 1).astype(jnp.int32)
        class_axis = 1

    if tile_b is None:
        tile_b = _choose_tile_b(B, C, itemsize, batch_on_lanes)
    tile_b = min(tile_b, B)
    num_tiles = -(-B // tile_b)                     # partial last block masked in-kernel

    if batch_on_lanes:
        logits_spec = pl.BlockSpec((C, tile_b), lambda i: (0, i))
        tgt_spec = pl.BlockSpec((1, tile_b), lambda i: (0, i))
    else:
        logits_spec = pl.BlockSpec((tile_b, C), lambda i: (i, 0))
        tgt_spec = pl.BlockSpec((tile_b, 1), lambda i: (i, 0))

    kernel = _make_dkd_kernel(class_axis, B, tile_b, ALPHA, BETA, TEMPERATURE)

    partials = pl.pallas_call(
        kernel,
        out_shape=jax.ShapeDtypeStruct((num_tiles, 1), jnp.float32),
        grid=(num_tiles,),
        in_specs=[logits_spec, logits_spec, tgt_spec],
        out_specs=pl.BlockSpec((1, 1), lambda i: (i, 0),
                               memory_space=pltpu.MemorySpace.SMEM),
        compiler_params=pltpu.CompilerParams(
            dimension_semantics=("parallel",),      # independent tiles -> both TCs
            vmem_limit_bytes=(3 * _physical_vmem_bytes()) // 4),
    )(ls, lt, tgt)

    return jnp.sum(partials) * jnp.float32(TEMPERATURE * TEMPERATURE) / B


def _dkd_loss_ref(logits_student, logits_teacher, target):
    """Pure-JAX reference (mirrors the PyTorch module, incl. the -1000 trick)."""
    B, C = logits_student.shape
    T = TEMPERATURE
    gt = jax.nn.one_hot(target, C, dtype=jnp.float32)
    other = 1.0 - gt
    ps = jax.nn.softmax(logits_student / T, axis=1)
    pt = jax.nn.softmax(logits_teacher / T, axis=1)
    ps_bin = jnp.concatenate([jnp.sum(ps * gt, 1, keepdims=True),
                              jnp.sum(ps * other, 1, keepdims=True)], axis=1)
    pt_bin = jnp.concatenate([jnp.sum(pt * gt, 1, keepdims=True),
                              jnp.sum(pt * other, 1, keepdims=True)], axis=1)
    xlogy = lambda p: jnp.where(p > 0, p * jnp.log(jnp.where(p > 0, p, 1.0)), 0.0)
    tckd = jnp.sum(xlogy(pt_bin) - pt_bin * jnp.log(ps_bin)) * T * T / B
    pt2 = jax.nn.softmax(logits_teacher / T - 1000.0 * gt, axis=1)
    lps2 = jax.nn.log_softmax(logits_student / T - 1000.0 * gt, axis=1)
    nckd = jnp.sum(xlogy(pt2) - pt2 * lps2) * T * T / B
    return ALPHA * tckd + BETA * nckd


if __name__ == "__main__":
    # IEMOCAP-like tiny shape (exercises the batch-on-lanes small-C path).
    k1, k2, k3 = jax.random.split(jax.random.PRNGKey(0), 3)
    B, C = 8, 4  # batch=8, 4 emotion classes
    logits_student = jax.random.normal(k1, (B, C), dtype=jnp.float32)
    logits_teacher = jax.random.normal(k2, (B, C), dtype=jnp.float32)
    target = jax.random.randint(k3, (B,), 0, C, dtype=jnp.int32)

    loss = jax.block_until_ready(dkd_loss(logits_student, logits_teacher, target))
    ref = _dkd_loss_ref(logits_student, logits_teacher, target)
    assert jnp.allclose(loss, ref, rtol=1e-3, atol=1e-5), (loss, ref)

    # Larger-C shape: exercises the classes-on-lanes path, a multi-tile
    # "parallel" grid and the in-kernel partial-last-block masking.
    k4, k5, k6 = jax.random.split(jax.random.PRNGKey(1), 3)
    B2, C2 = 60, 256
    ls2 = jax.random.normal(k4, (B2, C2), dtype=jnp.float32)
    lt2 = jax.random.normal(k5, (B2, C2), dtype=jnp.float32)
    tg2 = jax.random.randint(k6, (B2,), 0, C2, dtype=jnp.int32)

    loss2 = jax.block_until_ready(dkd_loss(ls2, lt2, tg2))
    ref2 = _dkd_loss_ref(ls2, lt2, tg2)
    assert jnp.allclose(loss2, ref2, rtol=1e-3, atol=1e-5), (loss2, ref2)

    print("KERNEL_OK")
</pallas_src>

<mosaic_0001>
module attributes {stable_mosaic.version = 11 : i64} {
  func.func @kernel(%arg0: i32, %arg1: memref<4x8xf32, #tpu.memory_space<vmem>>, %arg2: memref<4x8xf32, #tpu.memory_space<vmem>>, %arg3: memref<1x8xi32, #tpu.memory_space<vmem>>, %arg4: memref<1x1xf32, #tpu.memory_space<smem>>) attributes {dimension_semantics = [#tpu.dimension_semantics<parallel>], iteration_bounds = array<i64: 1>, scalar_prefetch = 0 : i64, scratch_operands = 0 : i64, tpu.core_type = #tpu.core_type<tc>, window_params = [{transform_indices = @transform_0, window_bounds = array<i64: 4, 8>}, {transform_indices = @transform_1, window_bounds = array<i64: 4, 8>}, {transform_indices = @transform_2, window_bounds = array<i64: 1, 8>}, {transform_indices = @transform_3, window_bounds = array<i64: 1, 1>}]} {
    %c0 = arith.constant 0 : index
    %c0_0 = arith.constant 0 : index
    %0 = vector.load %arg1[%c0, %c0_0] : memref<4x8xf32, #tpu.memory_space<vmem>>, vector<4x8xf32>
    %c0_1 = arith.constant 0 : index
    %c0_2 = arith.constant 0 : index
    %1 = vector.load %arg2[%c0_1, %c0_2] : memref<4x8xf32, #tpu.memory_space<vmem>>, vector<4x8xf32>
    %c0_3 = arith.constant 0 : index
    %c0_4 = arith.constant 0 : index
    %2 = vector.load %arg3[%c0_3, %c0_4] : memref<1x8xi32, #tpu.memory_space<vmem>>, vector<1x8xi32>
    %3 = tpu.iota {dimensions = array<i32: 0>} : vector<4x8xi32>
    %4 = vector.broadcast %2 : vector<1x8xi32> to vector<4x8xi32>
    %5 = arith.cmpi eq, %3, %4 : vector<4x8xi32>
    %cst = arith.constant dense<0xFF800000> : vector<8xf32>
    %6 = vector.multi_reduction <maximumf>, %0, %cst [0] : vector<4x8xf32> to vector<8xf32>
    %7 = vector.shape_cast %6 : vector<8xf32> to vector<1x8xf32>
    %8 = vector.broadcast %7 : vector<1x8xf32> to vector<4x8xf32>
    %9 = arith.subf %0, %8 : vector<4x8xf32>
    %10 = math.exp %9 : vector<4x8xf32>
    %cst_5 = arith.constant dense<0.000000e+00> : vector<8xf32>
    %11 = vector.multi_reduction <add>, %10, %cst_5 [0] : vector<4x8xf32> to vector<8xf32>
    %12 = vector.shape_cast %11 : vector<8xf32> to vector<1x8xf32>
    %13 = math.log %12 : vector<1x8xf32>
    %14 = vector.broadcast %13 : vector<1x8xf32> to vector<4x8xf32>
    %15 = arith.subf %9, %14 : vector<4x8xf32>
    %cst_6 = arith.constant dense<0xFF800000> : vector<8xf32>
    %16 = vector.multi_reduction <maximumf>, %1, %cst_6 [0] : vector<4x8xf32> to vector<8xf32>
    %17 = vector.shape_cast %16 : vector<8xf32> to vector<1x8xf32>
    %18 = vector.broadcast %17 : vector<1x8xf32> to vector<4x8xf32>
    %19 = arith.subf %1, %18 : vector<4x8xf32>
    %20 = math.exp %19 : vector<4x8xf32>
    %cst_7 = arith.constant dense<0.000000e+00> : vector<8xf32>
    %21 = vector.multi_reduction <add>, %20, %cst_7 [0] : vector<4x8xf32> to vector<8xf32>
    %22 = vector.shape_cast %21 : vector<8xf32> to vector<1x8xf32>
    %23 = math.log %22 : vector<1x8xf32>
    %24 = vector.broadcast %23 : vector<1x8xf32> to vector<4x8xf32>
    %25 = arith.subf %19, %24 : vector<4x8xf32>
    %26 = vector.broadcast %22 : vector<1x8xf32> to vector<4x8xf32>
    %27 = arith.divf %20, %26 : vector<4x8xf32>
    %cst_8 = arith.constant 0.000000e+00 : f32
    %28 = vector.broadcast %cst_8 : f32 to vector<4x8xf32>
    %29 = arith.select %5, %15, %28 : vector<4x8xi1>, vector<4x8xf32>
    %cst_9 = arith.constant dense<0.000000e+00> : vector<8xf32>
    %30 = vector.multi_reduction <add>, %29, %cst_9 [0] : vector<4x8xf32> to vector<8xf32>
    %31 = vector.shape_cast %30 : vector<8xf32> to vector<1x8xf32>
    %cst_10 = arith.constant 0.000000e+00 : f32
    %32 = vector.broadcast %cst_10 : f32 to vector<4x8xf32>
    %33 = arith.select %5, %25, %32 : vector<4x8xi1>, vector<4x8xf32>
    %cst_11 = arith.constant dense<0.000000e+00> : vector<8xf32>
    %34 = vector.multi_reduction <add>, %33, %cst_11 [0] : vector<4x8xf32> to vector<8xf32>
    %35 = vector.shape_cast %34 : vector<8xf32> to vector<1x8xf32>
    %cst_12 = arith.constant 0.000000e+00 : f32
    %36 = vector.broadcast %cst_12 : f32 to vector<4x8xf32>
    %37 = arith.select %5, %36, %10 : vector<4x8xi1>, vector<4x8xf32>
    %cst_13 = arith.constant dense<0.000000e+00> : vector<8xf32>
    %38 = vector.multi_reduction <add>, %37, %cst_13 [0] : vector<4x8xf32> to vector<8xf32>
    %39 = vector.shape_cast %38 : vector<8xf32> to vector<1x8xf32>
    %40 = arith.divf %39, %12 : vector<1x8xf32>
    %cst_14 = arith.constant 1.000000e-30 : f32
    %41 = vector.broadcast %cst_14 : f32 to vector<1x8xf32>
    %42 = arith.maximumf %40, %41 : vector<1x8xf32>
    %cst_15 = arith.constant 0.000000e+00 : f32
    %43 = vector.broadcast %cst_15 : f32 to vector<4x8xf32>
    %44 = arith.select %5, %43, %20 : vector<4x8xi1>, vector<4x8xf32>
    %cst_16 = arith.constant dense<0.000000e+00> : vector<8xf32>
    %45 = vector.multi_reduction <add>, %44, %cst_16 [0] : vector<4x8xf32> to vector<8xf32>
    %46 = vector.shape_cast %45 : vector<8xf32> to vector<1x8xf32>
    %47 = arith.divf %46, %22 : vector<1x8xf32>
    %cst_17 = arith.constant 1.000000e-30 : f32
    %48 = vector.broadcast %cst_17 : f32 to vector<1x8xf32>
    %49 = arith.maximumf %47, %48 : vector<1x8xf32>
    %50 = math.exp %35 : vector<1x8xf32>
    %51 = math.log %42 : vector<1x8xf32>
    %52 = math.log %49 : vector<1x8xf32>
    %53 = arith.subf %35, %31 : vector<1x8xf32>
    %54 = arith.mulf %50, %53 : vector<1x8xf32>
    %55 = arith.subf %52, %51 : vector<1x8xf32>
    %56 = arith.mulf %49, %55 : vector<1x8xf32>
    %57 = arith.addf %54, %56 : vector<1x8xf32>
    %58 = arith.subf %25, %15 : vector<4x8xf32>
    %59 = arith.mulf %27, %58 : vector<4x8xf32>
    %cst_18 = arith.constant dense<0.000000e+00> : vector<8xf32>
    %60 = vector.multi_reduction <add>, %59, %cst_18 [0] : vector<4x8xf32> to vector<8xf32>
    %61 = vector.shape_cast %60 : vector<8xf32> to vector<1x8xf32>
    %62 = arith.subf %61, %54 : vector<1x8xf32>
    %63 = arith.divf %62, %49 : vector<1x8xf32>
    %64 = arith.subf %51, %52 : vector<1x8xf32>
    %65 = arith.addf %63, %64 : vector<1x8xf32>
    %cst_19 = arith.constant 1.000000e+00 : f32
    %66 = vector.broadcast %cst_19 : f32 to vector<1x8xf32>
    %67 = arith.mulf %66, %57 : vector<1x8xf32>
    %cst_20 = arith.constant 2.500000e-01 : f32
    %68 = vector.broadcast %cst_20 : f32 to vector<1x8xf32>
    %69 = arith.mulf %68, %65 : vector<1x8xf32>
    %70 = arith.addf %67, %69 : vector<1x8xf32>
    %71 = tpu.iota {dimensions = array<i32: 1>} : vector<1x8xi32>
    %c8_i32 = arith.constant 8 : i32
    %72 = arith.muli %arg0, %c8_i32 : i32
    %73 = vector.broadcast %72 : i32 to vector<1x8xi32>
    %74 = arith.addi %71, %73 : vector<1x8xi32>
    %c8_i32_21 = arith.constant 8 : i32
    %75 = vector.broadcast %c8_i32_21 : i32 to vector<1x8xi32>
    %76 = arith.cmpi slt, %74, %75 : vector<1x8xi32>
    %cst_22 = arith.constant 0.000000e+00 : f32
    %77 = vector.broadcast %cst_22 : f32 to vector<1x8xf32>
    %78 = arith.select %76, %70, %77 : vector<1x8xi1>, vector<1x8xf32>
    %79 = vector.shape_cast %78 : vector<1x8xf32> to vector<1x1x8xf32>
    %cst_23 = arith.constant dense<0.000000e+00> : vector<1xf32>
    %80 = vector.multi_reduction <add>, %79, %cst_23 [1, 2] : vector<1x1x8xf32> to vector<1xf32>
    %81 = vector.shape_cast %80 : vector<1xf32> to vector<1x1x1xf32>
    %82 = vector.extract %81[0, 0, 0] : f32 from vector<1x1x1xf32>
    %c0_24 = arith.constant 0 : index
    %c0_25 = arith.constant 0 : index
    %83 = memref.load %arg4[%c0_24, %c0_25] : memref<1x1xf32, #tpu.memory_space<smem>>
    memref.store %82, %arg4[%c0_24, %c0_25] : memref<1x1xf32, #tpu.memory_space<smem>>
    return
  }
  func.func @transform_0(%arg0: i32) -> (i32, i32) {
    %c0_i32 = arith.constant 0 : i32
    %c0_i32_0 = arith.constant 0 : i32
    return %c0_i32, %arg0 : i32, i32
  }
  func.func @transform_1(%arg0: i32) -> (i32, i32) {
    %c0_i32 = arith.constant 0 : i32
    %c0_i32_0 = arith.constant 0 : i32
    return %c0_i32, %arg0 : i32, i32
  }
  func.func @transform_2(%arg0: i32) -> (i32, i32) {
    %c0_i32 = arith.constant 0 : i32
    %c0_i32_0 = arith.constant 0 : i32
    return %c0_i32, %arg0 : i32, i32
  }
  func.func @transform_3(%arg0: i32) -> (i32, i32) {
    %c0_i32 = arith.constant 0 : i32
    %c0_i32_0 = arith.constant 0 : i32
    return %arg0, %c0_i32 : i32, i32
  }
}

</mosaic_0001>

<llo_original>
// kernel: tpu_custom_call.1
$region0: #{tpu_custom_call.1}
  #allocation0 [shape = 'u32[]', space=smem, size = 0x4, offset = 0x4, fixed_abs, tag = 'smem constant byte address 0x4 - core index']
  #allocation1 [shape = 'u32[144,128]{1,0:T(1,128)}', space=vmem, size = 0x12000, scoped, tag = 'internal scratch']
  %s0 = inlined_call_operand.hbm [shape: f32[4,8], index: 0, kind: input, shape index: {}]
  %s1 = inlined_call_operand.hbm [shape: f32[4,8], index: 1, kind: input, shape index: {}]
  %s2 = inlined_call_operand.vmem [shape: s32[1,8], index: 2, kind: input, shape index: {}]
  %s3 = inlined_call_operand.hbm [shape: f32[1,1], index: 3, kind: output, shape index: {}]
  %s4 = sld [smem:[#allocation0]]
  $region30: #{tpu_custom_call.1} parent=0
    _
  %s6 = ssub.s32 1, %s4
  %s7 = scalar_select 0, %s6, %s4
  $region1: #{tpu_custom_call.1} parent=0
    #allocation2 [shape = 'u8[2048]{0}', space=vmem, size = 0x800, scoped, tag = 'input window, operand 0, single buffered']
    #allocation3 [shape = 's32[1]{0}', space=sflag, size = 0x4, scoped, tag = 'scoped memory for tpu_custom_call.1']
    #allocation4 [shape = 's32[1]{0}', space=sflag, size = 0x4, scoped, tag = 'scoped memory for tpu_custom_call.1']
    #allocation5 [shape = 'u8[2048]{0}', space=vmem, size = 0x800, scoped, tag = 'input window, operand 1, single buffered']
    #allocation6 [shape = 's32[1]{0}', space=sflag, size = 0x4, scoped, tag = 'scoped memory for tpu_custom_call.1']
    #allocation7 [shape = 'u8[512]{0}', space=smem, size = 0x200, scoped, tag = 'output window, operand 0, single buffered']
    %8 = vsyncpa [#allocation3], 0
    %9 = vsyncpa [#allocation6], 0
    %10 = vsyncpa [#allocation4], 0
    // Predicated region
    $region2: #{tpu_custom_call.1} parent=1 // pred_check
      _
    $region3: #{tpu_custom_call.1} parent=1 // pred_check_branch
      %12 = sbr.rel (0) target = $region5
    $region4: #{tpu_custom_call.1} parent=1 // pred_region
      %s14 = ssub.s32 64, 64
      %15 = vsyncadd [#allocation3], %s14
      %s17 = sshll.u32 [#allocation2], 4
      %s18 = int_to_ptr.vmem [resolvable:$true] %s17
      %20 = dma.hbm_to_vmem [thread:$0]  %s0, 64, %s18, [#allocation3]
    $region5: #{tpu_custom_call.1} parent=1 // pred_fallthru
      _
    // Predicated region
    $region6: #{tpu_custom_call.1} parent=1 // pred_check
      _
    $region7: #{tpu_custom_call.1} parent=1 // pred_check_branch
      %22 = sbr.rel (0) target = $region9
    $region8: #{tpu_custom_call.1} parent=1 // pred_region
      %s24 = ssub.s32 64, 64
      %25 = vsyncadd [#allocation6], %s24
      %s27 = sshll.u32 [#allocation5], 4
      %s28 = int_to_ptr.vmem [resolvable:$true] %s27
      %30 = dma.hbm_to_vmem [thread:$0]  %s1, 64, %s28, [#allocation6]
    $region9: #{tpu_custom_call.1} parent=1 // pred_fallthru
      _
    // Predicated region
    $region10: #{tpu_custom_call.1} parent=1 // pred_check
      _
    $region11: #{tpu_custom_call.1} parent=1 // pred_check_branch
      %32 = sbr.rel (0) target = $region13
    $region12: #{tpu_custom_call.1} parent=1 // pred_region
      _
    $region13: #{tpu_custom_call.1} parent=1 // pred_fallthru
      _
    // Predicated region
    $region14: #{tpu_custom_call.1} parent=1 // pred_check
      _
    $region15: #{tpu_custom_call.1} parent=1 // pred_check_branch
      %34 = sbr.rel (0) target = $region17
    $region16: #{tpu_custom_call.1} parent=1 // pred_region
      %35 = dma.done [#allocation3], 64
    $region17: #{tpu_custom_call.1} parent=1 // pred_fallthru
      _
    // Predicated region
    $region18: #{tpu_custom_call.1} parent=1 // pred_check
      _
    $region19: #{tpu_custom_call.1} parent=1 // pred_check_branch
      %37 = sbr.rel (0) target = $region21
    $region20: #{tpu_custom_call.1} parent=1 // pred_region
      %38 = dma.done [#allocation6], 64
    $region21: #{tpu_custom_call.1} parent=1 // pred_fallthru
      _
    %v39 = vld [vmem:[#allocation2] sm:$0xf]
    %v40 = vld [vmem:[#allocation5] sm:$0xf]
    %v41 = vld [vmem:[%s2] sm:$0x1]
    %v42 = vlaneseq
    %v43 = vshrl.u32 %v42, 7
    %v44 = vlaneseq
    %v45 = vshrl.u32 %v44, 7
    %v46 = vsub.s32 0, %v45
    %v47 = vrot.slane %v41, %v46
    %vm48 = vcmp.eq.s32.totalorder %v43, %v47
    %vm49 = vcmask 60416
    %v50 = vsel %vm49, %v39, -inf
    %v51 = vrot.slane %v50, 4
    %v52 = vmax.f32 %v50, %v51
    %v53 = vrot.slane %v52, 2
    %v54 = vmax.f32 %v52, %v53
    %v55 = vrot.slane %v54, 1
    %v56 = vmax.f32 %v54, %v55
    %v57 = vsub.f32 %v39, %v56
    %v58 = vmul.f32 %v57, 1.442695
    %v59 = vpow.pop %v58
    %v60 = vsel %vm49, %v59, 0.0
    %v61 = vrot.slane %v60, 4
    %v62 = vadd.f32 %v60, %v61
    %v63 = vrot.slane %v62, 2
    %v64 = vadd.f32 %v62, %v63
    %v65 = vrot.slane %v64, 1
    %v66 = vadd.f32 %v64, %v65
    %v67 = vlog2.pop %v66
    %v68 = vmul.f32 %v67, 0.6931472
    %v69 = vsub.f32 %v57, %v68
    %v70 = vsel %vm49, %v40, -inf
    %v71 = vrot.slane %v70, 4
    %v72 = vmax.f32 %v70, %v71
    %v73 = vrot.slane %v72, 2
    %v74 = vmax.f32 %v72, %v73
    %v75 = vrot.slane %v74, 1
    %v76 = vmax.f32 %v74, %v75
    %v77 = vsub.f32 %v40, %v76
    %v78 = vmul.f32 %v77, 1.442695
    %v79 = vpow.pop %v78
    %v80 = vsel %vm49, %v79, 0.0
    %v81 = vrot.slane %v80, 4
    %v82 = vadd.f32 %v80, %v81
    %v83 = vrot.slane %v82, 2
    %v84 = vadd.f32 %v82, %v83
    %v85 = vrot.slane %v84, 1
    %v86 = vadd.f32 %v84, %v85
    %v87 = vlog2.pop %v86
    %v88 = vmul.f32 %v87, 0.6931472
    %v89 = vsub.f32 %v77, %v88
    %v90 = vrcp.pop %v86
    %v91 = vmul.f32 %v79, %v90
    %v92 = vsel %vm48, %v69, 0.0
    %v93 = vsel %vm49, %v92, 0.0
    %v94 = vrot.slane %v93, 4
    %v95 = vadd.f32 %v93, %v94
    %v96 = vrot.slane %v95, 2
    %v97 = vadd.f32 %v95, %v96
    %v98 = vrot.slane %v97, 1
    %v99 = vadd.f32 %v97, %v98
    %v100 = vsel %vm48, %v89, 0.0
    %v101 = vsel %vm49, %v100, 0.0
    %v102 = vrot.slane %v101, 4
    %v103 = vadd.f32 %v101, %v102
    %v104 = vrot.slane %v103, 2
    %v105 = vadd.f32 %v103, %v104
    %v106 = vrot.slane %v105, 1
    %v107 = vadd.f32 %v105, %v106
    %v108 = vsel %vm48, 0.0, %v59
    %v109 = vsel %vm49, %v108, 0.0
    %v110 = vrot.slane %v109, 4
    %v111 = vadd.f32 %v109, %v110
    %v112 = vrot.slane %v111, 2
    %v113 = vadd.f32 %v111, %v112
    %v114 = vrot.slane %v113, 1
    %v115 = vadd.f32 %v113, %v114
    %v116 = vrcp.pop %v66
    %v117 = vmul.f32 %v115, %v116
    %v118 = vmax.f32 %v117, 1e-30
    %v119 = vsel %vm48, 0.0, %v79
    %v120 = vsel %vm49, %v119, 0.0
    %v121 = vrot.slane %v120, 4
    %v122 = vadd.f32 %v120, %v121
    %v123 = vrot.slane %v122, 2
    %v124 = vadd.f32 %v122, %v123
    %v125 = vrot.slane %v124, 1
    %v126 = vadd.f32 %v124, %v125
    %v127 = vmul.f32 %v126, %v90
    %v128 = vmax.f32 %v127, 1e-30
    %v129 = vmul.f32 %v107, 1.442695
    %v130 = vpow.pop %v129
    %v131 = vlog2.pop %v118
    %v132 = vmul.f32 %v131, 0.6931472
    %v133 = vlog2.pop %v128
    %v134 = vmul.f32 %v133, 0.6931472
    %v135 = vsub.f32 %v107, %v99
    %v136 = vmul.f32 %v130, %v135
    %v137 = vsub.f32 %v134, %v132
    %v138 = vmul.f32 %v128, %v137
    %v139 = vadd.f32 %v136, %v138
    %v140 = vsub.f32 %v89, %v69
    %v141 = vmul.f32 %v91, %v140
    %v142 = vsel %vm49, %v141, 0.0
    %v143 = vrot.slane %v142, 4
    %v144 = vadd.f32 %v142, %v143
    %v145 = vrot.slane %v144, 2
    %v146 = vadd.f32 %v144, %v145
    %v147 = vrot.slane %v146, 1
    %v148 = vadd.f32 %v146, %v147
    %v149 = vsub.f32 %v148, %v136
    %v150 = vrcp.pop %v128
    %v151 = vmul.f32 %v149, %v150
    %v152 = vsub.f32 %v132, %v134
    %v153 = vadd.f32 %v151, %v152
    %v154 = vmul.f32 %v153, 0.25
    %v155 = vadd.f32 %v139, %v154
    %v156 = vlaneseq
    %v157 = vand.u32 %v156, 127
    %s158 = smul.u32 0, 8
    %v159 = vstv %s158
    %v160 = vadd.s32 %v157, %v159
    %vm161 = vcmp.lt.s32.totalorder %v160, 8
    %v162 = vsel %vm161, %v155, 0.0
    %vm163 = vcmask 57344
    %v164 = vsel %vm163, %v162, 0.0
    %165 = vadd.xlane.f32.xlu0 %v164
    %v166 = vpop.xlane.xlu0 %165
    %v167 = vrot.slane %v166, 4
    %v168 = vadd.f32 %v166, %v167
    %v169 = vrot.slane %v168, 2
    %v170 = vadd.f32 %v168, %v169
    %v171 = vrot.slane %v170, 1
    %v172 = vadd.f32 %v170, %v171
    %s173 = vtos %v172
    %s174 = scalar_lea.smem [#allocation7], 0
    %175 = sst [smem:[%s174]] %s173
    // Predicated region
    $region22: #{tpu_custom_call.1} parent=1 // pred_check
      _
    $region23: #{tpu_custom_call.1} parent=1 // pred_check_branch
      %177 = sbr.rel (0) target = $region25
    $region24: #{tpu_custom_call.1} parent=1 // pred_region
      %s179 = ssub.s32 16, 16
      %180 = vsyncadd [#allocation4], %s179
      %183 = dma.smem_to_hbm [#allocation7], 16, %s3, [#allocation4]
    $region25: #{tpu_custom_call.1} parent=1 // pred_fallthru
      _
    // Predicated region
    $region26: #{tpu_custom_call.1} parent=1 // pred_check
      _
    $region27: #{tpu_custom_call.1} parent=1 // pred_check_branch
      %185 = sbr.rel (0) target = $region29
    $region28: #{tpu_custom_call.1} parent=1 // pred_region
      %186 = dma.done [#allocation4], 16
    $region29: #{tpu_custom_call.1} parent=1 // pred_fallthru
      _
    %187 = sfence
    %188 = vsyncpa [#allocation3], 1
    %189 = vsyncpa [#allocation6], 1
    %190 = vsyncpa [#allocation4], 1

</llo_original>
